<compile_context>
chip_gen: v6e
topology: v6e:2x2x1
jax: 0.10.0
libtpu: 0.0.40
codegen_flags: <defaults>
</compile_context>

<pallas_src>
import math
import functools

import numpy as np
import jax
import jax.numpy as jnp
from jax.experimental import pallas as pl
from jax.experimental.pallas import tpu as pltpu


def _round_up(x: int, m: int) -> int:
    return ((x + m - 1) // m) * m


def _cdiv(a: int, b: int) -> int:
    return -(-a // b)


def _sinusoidal_kernel(x_ref, coef_ref, o_ref, *, x_dim, use_identity):
    """One lane tile.

    x_ref:    [x_dim, tn]          input features, rows on the lane axis.
    coef_ref: [rows_pad, x_dim+2]  per-output-row coefficients:
                cols 0..x_dim-1 : weight of input dim d (scale, 1.0, or 0.0)
                col  x_dim      : additive phase (0 or pi/2 for the cos rows)
                col  x_dim+1    : 1.0 if the row is an identity row
    o_ref:    [tn, latent_dim]     row-major output tile.
    """
    x = x_ref[...].astype(jnp.float32)          # (x_dim, tn)
    coef = coef_ref[...]                        # (rows_pad, x_dim + 2), f32
    rows_pad = coef.shape[0]
    tn = x.shape[1]

    # Dense (rows_pad, tn) pre-activation block:
    #   acc[r, :] = sum_d x[d, :] * coef[r, d] + coef[r, x_dim]
    # Built from cheap sublane broadcasts + VPU mul/add; exact for the
    # identity rows (weights are 1/0) and for the power-of-two scales.
    acc = jnp.broadcast_to(coef[:, x_dim:x_dim + 1], (rows_pad, tn))
    for d in range(x_dim):
        xd = jnp.broadcast_to(x[d:d + 1, :], (rows_pad, tn))
        acc = acc + xd * coef[:, d:d + 1]

    latent = jnp.sin(acc)                       # single dense EUP pass
    if use_identity:
        is_id = coef[:, x_dim + 1:x_dim + 2] > 0.5
        latent = jnp.where(is_id, acc, latent)  # identity rows pass through x

    # Aligned (rows_pad multiple of 8, tn multiple of 128) in-kernel transpose
    # to the row-major output layout, then one full-block store.
    out_rm = latent.T                           # (tn, rows_pad)
    o_ref[...] = out_rm[:, :o_ref.shape[1]].astype(o_ref.dtype)


class SinusoidalEncoder:
    """JAX/Pallas port of the PyTorch SinusoidalEncoder."""

    _TN_TARGET = 16384     # target rows per grid step (f32)
    _TWO_TILE_MIN = 8192   # above this row count, force >=2 grid steps (v7x: 2 TCs)

    def __init__(self, x_dim, min_deg, max_deg, use_identity: bool = True):
        self.x_dim = x_dim
        self.min_deg = min_deg
        self.max_deg = max_deg
        self.use_identity = use_identity
        # deterministic "buffer" (same as torch.register_buffer in __init__)
        self.scales = tuple(float(2 ** i) for i in range(min_deg, max_deg))
        self._coef_np, self._rows_pad = self._build_coef()

    @property
    def latent_dim(self) -> int:
        return (int(self.use_identity) + (self.max_deg - self.min_deg) * 2) * self.x_dim

    # ---- compile-time coefficient table -------------------------------------
    def _build_coef(self):
        if self.max_deg == self.min_deg:
            return None, 0
        latent_dim = self.latent_dim
        rows_pad = _round_up(max(latent_dim, 8), 8)
        coef = np.zeros((rows_pad, self.x_dim + 2), dtype=np.float32)
        r = 0
        if self.use_identity:
            for d in range(self.x_dim):
                coef[r, d] = 1.0
                coef[r, self.x_dim + 1] = 1.0
                r += 1
        # Output order matches the PyTorch reference exactly:
        #   [x?, sin(x*s0), sin(x*s1), ..., cos(x*s0), cos(x*s1), ...]
        # (scale-major / dim-minor; cos implemented as sin(. + pi/2)).
        for phase in (0.0, 0.5 * math.pi):
            for s in self.scales:
                for d in range(self.x_dim):
                    coef[r, d] = s
                    coef[r, self.x_dim] = phase
                    r += 1
        assert r == latent_dim
        return coef, rows_pad

    # ---- tile selection ------------------------------------------------------
    def _tiles(self, n8: int):
        g = _cdiv(n8, self._TN_TARGET)
        if n8 > self._TWO_TILE_MIN:
            g = max(g, 2)                         # let v7x's two cores both work
        tn = _round_up(_cdiv(n8, g), 128)         # lane-dim alignment, low padding waste
        return tn, tn * g, g

    # ---- forward -------------------------------------------------------------
    def __call__(self, x: jax.Array) -> jax.Array:
        if self.max_deg == self.min_deg:
            return x

        orig_shape = x.shape
        assert orig_shape[-1] == self.x_dim
        latent_dim = self.latent_dim

        x2d = x.reshape(-1, self.x_dim)
        n = x2d.shape[0]
        if n == 0:  # empty-input guard
            return jnp.zeros((*orig_shape[:-1], latent_dim), dtype=x.dtype)

        n8 = _round_up(n, 8)
        tn, n_pad, g = self._tiles(n8)

        xt = x2d.T                                 # [x_dim, n] — cheap layout plumbing
        if n_pad != n:
            xt = jnp.pad(xt, ((0, 0), (0, n_pad - n)))
        coef = jnp.asarray(self._coef_np)          # [rows_pad, x_dim+2]

        kernel = functools.partial(
            _sinusoidal_kernel, x_dim=self.x_dim, use_identity=self.use_identity
        )

        itemsize = jnp.dtype(x.dtype).itemsize
        cost = pl.CostEstimate(
            flops=2 * n_pad * self._rows_pad * (self.x_dim + 1),
            transcendentals=n_pad * self._rows_pad,
            bytes_accessed=n_pad * (self.x_dim + latent_dim) * itemsize,
        )

        out = pl.pallas_call(
            kernel,
            out_shape=jax.ShapeDtypeStruct((n_pad, latent_dim), x.dtype),
            grid=(g,),
            in_specs=[
                pl.BlockSpec((self.x_dim, tn), lambda i: (0, i)),
                pl.BlockSpec((self._rows_pad, self.x_dim + 2), lambda i: (0, 0)),
            ],
            out_specs=pl.BlockSpec((tn, latent_dim), lambda i: (i, 0)),
            compiler_params=pltpu.CompilerParams(
                dimension_semantics=("parallel",),
                vmem_limit_bytes=48 * 1024 * 1024,
            ),
            cost_estimate=cost,
        )(xt, coef)

        if n_pad != n:
            out = out[:n]                          # strip padded rows (only if ragged)
        return out.reshape(*orig_shape[:-1], latent_dim)


def _reference(x, min_deg, max_deg, use_identity):
    """Pure-JAX reference mirroring the PyTorch forward exactly."""
    if max_deg == min_deg:
        return x
    scales = jnp.asarray([2.0 ** i for i in range(min_deg, max_deg)], dtype=x.dtype)
    xb = (x[..., None, :] * scales[:, None]).reshape(
        *x.shape[:-1], (max_deg - min_deg) * x.shape[-1]
    )
    latent = jnp.sin(jnp.concatenate([xb, xb + 0.5 * math.pi], axis=-1))
    if use_identity:
        latent = jnp.concatenate([x, latent], axis=-1)
    return latent


if __name__ == "__main__":
    key = jax.random.PRNGKey(0)

    # Typical NeRF config: 3-D points, degrees [0, 4), identity concat.
    x_dim, min_deg, max_deg = 3, 0, 4
    enc = SinusoidalEncoder(x_dim, min_deg, max_deg, use_identity=True)

    # x: [batch, rays, x_dim] -> latent: [batch, rays, latent_dim=27]
    x = jax.random.normal(key, (2, 64, x_dim), dtype=jnp.float32)
    out = jax.block_until_ready(enc(x))
    ref = _reference(x, min_deg, max_deg, True)
    assert out.shape == (2, 64, enc.latent_dim), out.shape
    assert jnp.allclose(out, ref, atol=1e-5, rtol=1e-5), float(
        jnp.max(jnp.abs(out - ref))
    )

    # Ragged / non-128-divisible row count -> exercises the pad + strip path.
    x_odd = jax.random.normal(jax.random.PRNGKey(1), (5, 7, x_dim), dtype=jnp.float32)
    out_odd = jax.block_until_ready(enc(x_odd))
    ref_odd = _reference(x_odd, min_deg, max_deg, True)
    assert out_odd.shape == (5, 7, enc.latent_dim), out_odd.shape
    assert jnp.allclose(out_odd, ref_odd, atol=1e-5, rtol=1e-5), float(
        jnp.max(jnp.abs(out_odd - ref_odd))
    )

    # No-identity variant.
    enc2 = SinusoidalEncoder(x_dim, 0, 3, use_identity=False)
    x2 = jax.random.normal(jax.random.PRNGKey(2), (4, 9, x_dim), dtype=jnp.float32)
    out2 = jax.block_until_ready(enc2(x2))
    ref2 = _reference(x2, 0, 3, False)
    assert out2.shape == (4, 9, enc2.latent_dim), out2.shape
    assert jnp.allclose(out2, ref2, atol=1e-5, rtol=1e-5), float(
        jnp.max(jnp.abs(out2 - ref2))
    )

    print("KERNEL_OK")
</pallas_src>

<mosaic_0001>
module attributes {stable_mosaic.version = 11 : i64} {
  func.func @_sinusoidal_kernel(%arg0: i32, %arg1: memref<3x128xf32, #tpu.memory_space<vmem>>, %arg2: memref<32x5xf32, #tpu.memory_space<vmem>>, %arg3: memref<128x27xf32, #tpu.memory_space<vmem>>) attributes {dimension_semantics = [#tpu.dimension_semantics<parallel>], iteration_bounds = array<i64: 1>, scalar_prefetch = 0 : i64, scratch_operands = 0 : i64, tpu.core_type = #tpu.core_type<tc>, window_params = [{transform_indices = @transform_0, window_bounds = array<i64: 3, 128>}, {pipeline_mode = #tpu.pipeline_mode<synchronous>, transform_indices = @transform_1, window_bounds = array<i64: 32, 5>}, {transform_indices = @transform_2, window_bounds = array<i64: 128, 27>}]} {
    %c0 = arith.constant 0 : index
    %c0_0 = arith.constant 0 : index
    %0 = vector.load %arg1[%c0, %c0_0] : memref<3x128xf32, #tpu.memory_space<vmem>>, vector<3x128xf32>
    %c0_1 = arith.constant 0 : index
    %c0_2 = arith.constant 0 : index
    %1 = vector.load %arg2[%c0_1, %c0_2] : memref<32x5xf32, #tpu.memory_space<vmem>>, vector<32x5xf32>
    %2 = vector.extract_strided_slice %1 {offsets = [0, 3], sizes = [32, 1], strides = [1, 1]} : vector<32x5xf32> to vector<32x1xf32>
    %3 = vector.shape_cast %2 : vector<32x1xf32> to vector<32x1xf32>
    %4 = vector.broadcast %3 : vector<32x1xf32> to vector<32x128xf32>
    %5 = vector.extract_strided_slice %0 {offsets = [0, 0], sizes = [1, 128], strides = [1, 1]} : vector<3x128xf32> to vector<1x128xf32>
    %6 = vector.shape_cast %5 : vector<1x128xf32> to vector<1x128xf32>
    %7 = vector.broadcast %6 : vector<1x128xf32> to vector<32x128xf32>
    %8 = vector.extract_strided_slice %1 {offsets = [0, 0], sizes = [32, 1], strides = [1, 1]} : vector<32x5xf32> to vector<32x1xf32>
    %9 = vector.broadcast %8 : vector<32x1xf32> to vector<32x128xf32>
    %10 = arith.mulf %7, %9 : vector<32x128xf32>
    %11 = arith.addf %4, %10 : vector<32x128xf32>
    %12 = vector.extract_strided_slice %0 {offsets = [1, 0], sizes = [1, 128], strides = [1, 1]} : vector<3x128xf32> to vector<1x128xf32>
    %13 = vector.shape_cast %12 : vector<1x128xf32> to vector<1x128xf32>
    %14 = vector.broadcast %13 : vector<1x128xf32> to vector<32x128xf32>
    %15 = vector.extract_strided_slice %1 {offsets = [0, 1], sizes = [32, 1], strides = [1, 1]} : vector<32x5xf32> to vector<32x1xf32>
    %16 = vector.broadcast %15 : vector<32x1xf32> to vector<32x128xf32>
    %17 = arith.mulf %14, %16 : vector<32x128xf32>
    %18 = arith.addf %11, %17 : vector<32x128xf32>
    %19 = vector.extract_strided_slice %0 {offsets = [2, 0], sizes = [1, 128], strides = [1, 1]} : vector<3x128xf32> to vector<1x128xf32>
    %20 = vector.shape_cast %19 : vector<1x128xf32> to vector<1x128xf32>
    %21 = vector.broadcast %20 : vector<1x128xf32> to vector<32x128xf32>
    %22 = vector.extract_strided_slice %1 {offsets = [0, 2], sizes = [32, 1], strides = [1, 1]} : vector<32x5xf32> to vector<32x1xf32>
    %23 = vector.broadcast %22 : vector<32x1xf32> to vector<32x128xf32>
    %24 = arith.mulf %21, %23 : vector<32x128xf32>
    %25 = arith.addf %18, %24 : vector<32x128xf32>
    %26 = math.sin %25 : vector<32x128xf32>
    %27 = vector.extract_strided_slice %1 {offsets = [0, 4], sizes = [32, 1], strides = [1, 1]} : vector<32x5xf32> to vector<32x1xf32>
    %cst = arith.constant 5.000000e-01 : f32
    %28 = vector.broadcast %cst : f32 to vector<32x1xf32>
    %29 = arith.cmpf ogt, %27, %28 : vector<32x1xf32>
    %30 = vector.shape_cast %29 : vector<32x1xi1> to vector<32x1xi1>
    %31 = vector.broadcast %30 : vector<32x1xi1> to vector<32x128xi1>
    %32 = arith.select %31, %25, %26 : vector<32x128xi1>, vector<32x128xf32>
    %33 = tpu.transpose %32, [1, 0] : vector<32x128xf32> -> vector<128x32xf32>
    %34 = vector.extract_strided_slice %33 {offsets = [0, 0], sizes = [128, 27], strides = [1, 1]} : vector<128x32xf32> to vector<128x27xf32>
    %c0_3 = arith.constant 0 : index
    %c0_4 = arith.constant 0 : index
    %35 = vector.load %arg3[%c0_3, %c0_4] : memref<128x27xf32, #tpu.memory_space<vmem>>, vector<128x27xf32>
    tpu.vector_store %arg3[%c0_3, %c0_4], %34 {strides = array<i32>} : memref<128x27xf32, #tpu.memory_space<vmem>>, vector<128x27xf32>,
    return
  }
  func.func @transform_0(%arg0: i32) -> (i32, i32) {
    %c0_i32 = arith.constant 0 : i32
    %c0_i32_0 = arith.constant 0 : i32
    return %c0_i32, %arg0 : i32, i32
  }
  func.func @transform_1(%arg0: i32) -> (i32, i32) {
    %c0_i32 = arith.constant 0 : i32
    %c0_i32_0 = arith.constant 0 : i32
    %c0_i32_1 = arith.constant 0 : i32
    return %c0_i32, %c0_i32_0 : i32, i32
  }
  func.func @transform_2(%arg0: i32) -> (i32, i32) {
    %c0_i32 = arith.constant 0 : i32
    %c0_i32_0 = arith.constant 0 : i32
    return %arg0, %c0_i32 : i32, i32
  }
}

</mosaic_0001>

<llo_original>
// kernel: tpu_custom_call.1
$region0: #{tpu_custom_call.1}
  #allocation0 [shape = 'u32[]', space=smem, size = 0x4, offset = 0x4, fixed_abs, tag = 'smem constant byte address 0x4 - core index']
  #allocation1 [shape = 'u32[144,128]{1,0:T(1,128)}', space=vmem, size = 0x12000, scoped, tag = 'internal scratch']
  %s0 = inlined_call_operand.vmem [shape: f32[3,128], index: 0, kind: input, shape index: {}]
  %s1 = inlined_call_operand.vmem [shape: f32[32,5], index: 1, kind: input, shape index: {}]
  %s2 = inlined_call_operand.vmem [shape: f32[128,27], index: 2, kind: output, shape index: {}]
  %s3 = sld [smem:[#allocation0]]
  $region18: #{tpu_custom_call.1} parent=0
    _
  %s5 = ssub.s32 1, %s3
  %s6 = scalar_select 0, %s5, %s3
  // Predicated region
  $region2: #{tpu_custom_call.1} parent=0 // pred_check
    _
  $region3: #{tpu_custom_call.1} parent=0 // pred_check_branch
    %8 = sbr.rel (0) target = $region5
  $region4: #{tpu_custom_call.1} parent=0 // pred_region
    _
  $region5: #{tpu_custom_call.1} parent=0 // pred_fallthru
    _
  // Predicated region
  $region6: #{tpu_custom_call.1} parent=0 // pred_check
    _
  $region7: #{tpu_custom_call.1} parent=0 // pred_check_branch
    %10 = sbr.rel (0) target = $region9
  $region8: #{tpu_custom_call.1} parent=0 // pred_region
    _
  $region9: #{tpu_custom_call.1} parent=0 // pred_fallthru
    _
  %v11 = vld [vmem:[%s0] sm:$0x7]
  %v12 = vld [vmem:[%s1] sm:$0xff]
  %v13 = vld [vmem:[%s1 + $0x8] sm:$0xff]
  %v14 = vld [vmem:[%s1 + $0x10] sm:$0xff]
  %v15 = vld [vmem:[%s1 + $0x18] sm:$0xff]
  %17 = vset.pattern.permute.xlu0 3
  %18 = vperm.xlu0 %17, %v12
  %v19 = vpop.permute.xlu0 %18
  %22 = vset.pattern.permute.xlu0 3
  %23 = vperm.xlu0 %22, %v13
  %v24 = vpop.permute.xlu0 %23
  %27 = vset.pattern.permute.xlu0 3
  %28 = vperm.xlu0 %27, %v14
  %v29 = vpop.permute.xlu0 %28
  %32 = vset.pattern.permute.xlu0 3
  %33 = vperm.xlu0 %32, %v15
  %v34 = vpop.permute.xlu0 %33
  %v36 = vlaneseq
  %v37 = vshrl.u32 %v36, 7
  %v38 = vsub.s32 0, %v37
  %v39 = vrot.slane %v11, %v38
  %40 = vset.pattern.permute.xlu0 0
  %41 = vperm.xlu0 %40, %v12
  %v42 = vpop.permute.xlu0 %41
  %44 = vset.pattern.permute.xlu0 0
  %45 = vperm.xlu0 %44, %v13
  %v46 = vpop.permute.xlu0 %45
  %48 = vset.pattern.permute.xlu0 0
  %49 = vperm.xlu0 %48, %v14
  %v50 = vpop.permute.xlu0 %49
  %52 = vset.pattern.permute.xlu0 0
  %53 = vperm.xlu0 %52, %v15
  %v54 = vpop.permute.xlu0 %53
  %v56 = vmul.f32 %v39, %v42
  %v57 = vmul.f32 %v39, %v46
  %v58 = vmul.f32 %v39, %v50
  %v59 = vmul.f32 %v39, %v54
  %v60 = vadd.f32 %v19, %v56
  %v61 = vadd.f32 %v24, %v57
  %v62 = vadd.f32 %v29, %v58
  %v63 = vadd.f32 %v34, %v59
  %v64 = vlaneseq
  %v65 = vshrl.u32 %v64, 7
  %v66 = vsub.s32 1, %v65
  %v67 = vrot.slane %v11, %v66
  %68 = vset.pattern.permute.xlu0 1
  %69 = vperm.xlu0 %68, %v12
  %v70 = vpop.permute.xlu0 %69
  %72 = vset.pattern.permute.xlu0 1
  %73 = vperm.xlu0 %72, %v13
  %v74 = vpop.permute.xlu0 %73
  %76 = vset.pattern.permute.xlu0 1
  %77 = vperm.xlu0 %76, %v14
  %v78 = vpop.permute.xlu0 %77
  %80 = vset.pattern.permute.xlu0 1
  %81 = vperm.xlu0 %80, %v15
  %v82 = vpop.permute.xlu0 %81
  %v84 = vmul.f32 %v67, %v70
  %v85 = vmul.f32 %v67, %v74
  %v86 = vmul.f32 %v67, %v78
  %v87 = vmul.f32 %v67, %v82
  %v88 = vadd.f32 %v60, %v84
  %v89 = vadd.f32 %v61, %v85
  %v90 = vadd.f32 %v62, %v86
  %v91 = vadd.f32 %v63, %v87
  %v92 = vlaneseq
  %v93 = vshrl.u32 %v92, 7
  %v94 = vsub.s32 2, %v93
  %v95 = vrot.slane %v11, %v94
  %96 = vset.pattern.permute.xlu0 2
  %97 = vperm.xlu0 %96, %v12
  %v98 = vpop.permute.xlu0 %97
  %100 = vset.pattern.permute.xlu0 2
  %101 = vperm.xlu0 %100, %v13
  %v102 = vpop.permute.xlu0 %101
  %104 = vset.pattern.permute.xlu0 2
  %105 = vperm.xlu0 %104, %v14
  %v106 = vpop.permute.xlu0 %105
  %108 = vset.pattern.permute.xlu0 2
  %109 = vperm.xlu0 %108, %v15
  %v110 = vpop.permute.xlu0 %109
  %v112 = vmul.f32 %v95, %v98
  %v113 = vmul.f32 %v95, %v102
  %v114 = vmul.f32 %v95, %v106
  %v115 = vmul.f32 %v95, %v110
  %v116 = vadd.f32 %v88, %v112
  %v117 = vadd.f32 %v89, %v113
  %v118 = vadd.f32 %v90, %v114
  %v119 = vadd.f32 %v91, %v115
  %v120 = vand.u32 2147483647, %v116
  %vm121 = vcmp.le.f32.partialorder %v120, 0.7853982
  %vm122 = vcmp.lt.s32.totalorder %v116, 0
  %v123 = vand.u32 %v116, 2139095040
  %v124 = vshrl.u32 %v123, 23
  %v125 = vsub.s32 %v124, 127
  %v126 = vand.u32 2147483647, %v116
  %v127 = vand.u32 %v126, 8388607
  %v128 = vor.u32 %v127, 8388608
  %v129 = vsub.s32 0, %v128
  %v130 = vadd.s32 %v125, 1
  %vm131 = vcmp.gt.s32.totalorder %v130, 0
  %v132 = vsel %vm131, %v130, 0
  %v133 = vshrl.u32 %v132, 5
  %v134 = vand.u32 %v132, 31
  %v135 = vsub.s32 32, %v134
  %v136 = vshrl.u32 683565275, %v135
  %v137 = vshll.u32 683565275, %v134
  %v138 = vshrl.u32 2475754826, %v135
  %v139 = vor.u32 %v137, %v138
  %v140 = vshll.u32 2475754826, %v134
  %v141 = vshrl.u32 2131351028, %v135
  %v142 = vor.u32 %v140, %v141
  %v143 = vshll.u32 2131351028, %v134
  %v144 = vshrl.u32 2102212464, %v135
  %v145 = vor.u32 %v143, %v144
  %v146 = vshll.u32 2102212464, %v134
  %v147 = vshrl.u32 920167782, %v135
  %v148 = vor.u32 %v146, %v147
  %v149 = vshll.u32 920167782, %v134
  %v150 = vshrl.u32 1326507024, %v135
  %v151 = vor.u32 %v149, %v150
  %vm152 = vcmp.lt.s32.totalorder %v133, 1
  %vm153 = vcmp.lt.s32.totalorder %v133, 2
  %vm154 = vcmp.lt.s32.totalorder %v133, 3
  %vm155 = vcmp.lt.s32.totalorder %v133, 4
  %v156 = vsel %vm152, %v136, %v139
  %v157 = vsel %vm155, %v145, 2102212464
  %v158 = vsel %vm154, %v142, %v157
  %v159 = vsel %vm153, %v156, %v158
  %v160 = vsel %vm152, %v139, %v142
  %v161 = vsel %vm155, %v148, 920167782
  %v162 = vsel %vm154, %v145, %v161
  %v163 = vsel %vm153, %v160, %v162
  %v164 = vsel %vm152, %v142, %v145
  %v165 = vsel %vm155, %v151, 1326507024
  %v166 = vsel %vm154, %v148, %v165
  %v167 = vsel %vm153, %v164, %v166
  %v168 = vshll.u32 %v128, 8
  %v169 = vmul.u32.u64.compose %v168, %v167
  %v170 = vextract.low.u32 %v169
  %v171 = vextract.high.u32 %v169
  %v172 = vmul.u32.u64.compose %v168, %v163
  %v173 = vextract.low.u32 %v172
  %v174 = vextract.high.u32 %v172
  %v175 = vmul.u32 %v168, %v159
  %v176 = vadd.s32 %v171, %v173
  %vm177 = vc.u32 %v171, %v173
  %v178 = vadd.s32 %v174, 1
  %v179 = vsel %vm177, %v178, %v174
  %v180 = vadd.s32 %v175, %v179
  %v181 = vadd.s32 %v180, 536870912
  %v182 = vshrl.u32 %v181, 30
  %v183 = vshll.u32 %v182, 30
  %v184 = vsub.s32 %v180, %v183
  %vm185 = vcmp.lt.s32.totalorder %v184, 0
  %v186 = vsub.s32 0, %v184
  %v187 = vsel %vm185, %v186, %v184
  %v188 = vclz %v187
  %v189 = vsub.s32 %v188, 2
  %vm190 = vcmp.gt.s32.totalorder 0, %v189
  %v191 = vsel %vm190, 0, %v189
  %v192 = vsub.s32 32, %v191
  %v193 = vshll.u32 %v184, %v191
  %v194 = vshrl.u32 %v176, %v192
  %v195 = vor.u32 %v193, %v194
  %v196 = vsub.s32 4294967266, %v191
  %v197 = vadd.s32 %v196, 127
  %v198 = vshll.u32 %v197, 23
  %v199 = vor.u32 4788187, %v198
  %v200 = vand.u32 2147483647, %v199
  %v202 = vcvt.s32.f32 %v195
  %v203 = vmul.f32 %v202, %v200
  %v204 = vxor.u32 %v203, 2147483648
  %v205 = vsel %vm122, %v204, %v203
  %v206 = vsub.s32 4, %v182
  %v207 = vsel %vm122, %v206, %v182
  %v208 = vsel %vm121, %v116, %v205
  %v209 = vsel %vm121, 0, %v207
  %v210 = vcosq.f32.pop %v208
  %v211 = vsinq.f32.pop %v208
  %vm212 = vweird.f32 %v116
  %v213 = vadd.s32 %v209, 3
  %v214 = vand.u32 %v213, 3
  %vm215 = vcmp.lt.s32.totalorder %v214, 2
  %vm216 = vcmp.eq.s32.totalorder %v214, 0
  %v217 = vxor.u32 %v211, 2147483648
  %v218 = vsel %vm216, %v210, %v217
  %vm219 = vcmp.eq.s32.totalorder %v214, 2
  %v220 = vxor.u32 %v210, 2147483648
  %v221 = vsel %vm219, %v220, %v211
  %v222 = vsel %vm215, %v218, %v221
  %v223 = vsel %vm212, nan, %v222
  %v224 = vand.u32 2147483647, %v117
  %vm225 = vcmp.le.f32.partialorder %v224, 0.7853982
  %vm226 = vcmp.lt.s32.totalorder %v117, 0
  %v227 = vand.u32 %v117, 2139095040
  %v228 = vshrl.u32 %v227, 23
  %v229 = vsub.s32 %v228, 127
  %v230 = vand.u32 2147483647, %v117
  %v231 = vand.u32 %v230, 8388607
  %v232 = vor.u32 %v231, 8388608
  %v233 = vsub.s32 0, %v232
  %v234 = vadd.s32 %v229, 1
  %vm235 = vcmp.gt.s32.totalorder %v234, 0
  %v236 = vsel %vm235, %v234, 0
  %v237 = vshrl.u32 %v236, 5
  %v238 = vand.u32 %v236, 31
  %v239 = vsub.s32 32, %v238
  %v240 = vshrl.u32 683565275, %v239
  %v241 = vshll.u32 683565275, %v238
  %v242 = vshrl.u32 2475754826, %v239
  %v243 = vor.u32 %v241, %v242
  %v244 = vshll.u32 2475754826, %v238
  %v245 = vshrl.u32 2131351028, %v239
  %v246 = vor.u32 %v244, %v245
  %v247 = vshll.u32 2131351028, %v238
  %v248 = vshrl.u32 2102212464, %v239
  %v249 = vor.u32 %v247, %v248
  %v250 = vshll.u32 2102212464, %v238
  %v251 = vshrl.u32 920167782, %v239
  %v252 = vor.u32 %v250, %v251
  %v253 = vshll.u32 920167782, %v238
  %v254 = vshrl.u32 1326507024, %v239
  %v255 = vor.u32 %v253, %v254
  %vm256 = vcmp.lt.s32.totalorder %v237, 1
  %vm257 = vcmp.lt.s32.totalorder %v237, 2
  %vm258 = vcmp.lt.s32.totalorder %v237, 3
  %vm259 = vcmp.lt.s32.totalorder %v237, 4
  %v260 = vsel %vm256, %v240, %v243
  %v261 = vsel %vm259, %v249, 2102212464
  %v262 = vsel %vm258, %v246, %v261
  %v263 = vsel %vm257, %v260, %v262
  %v264 = vsel %vm256, %v243, %v246
  %v265 = vsel %vm259, %v252, 920167782
  %v266 = vsel %vm258, %v249, %v265
  %v267 = vsel %vm257, %v264, %v266
  %v268 = vsel %vm256, %v246, %v249
  %v269 = vsel %vm259, %v255, 1326507024
  %v270 = vsel %vm258, %v252, %v269
  %v271 = vsel %vm257, %v268, %v270
  %v272 = vshll.u32 %v232, 8
  %v273 = vmul.u32.u64.compose %v272, %v271
  %v274 = vextract.low.u32 %v273
  %v275 = vextract.high.u32 %v273
  %v276 = vmul.u32.u64.compose %v272, %v267
  %v277 = vextract.low.u32 %v276
  %v278 = vextract.high.u32 %v276
  %v279 = vmul.u32 %v272, %v263
  %v280 = vadd.s32 %v275, %v277
  %vm281 = vc.u32 %v275, %v277
  %v282 = vadd.s32 %v278, 1
  %v283 = vsel %vm281, %v282, %v278
  %v284 = vadd.s32 %v279, %v283
  %v285 = vadd.s32 %v284, 536870912
  %v286 = vshrl.u32 %v285, 30
  %v287 = vshll.u32 %v286, 30
  %v288 = vsub.s32 %v284, %v287
  %vm289 = vcmp.lt.s32.totalorder %v288, 0
  %v290 = vsub.s32 0, %v288
  %v291 = vsel %vm289, %v290, %v288
  %v292 = vclz %v291
  %v293 = vsub.s32 %v292, 2
  %vm294 = vcmp.gt.s32.totalorder 0, %v293
  %v295 = vsel %vm294, 0, %v293
  %v296 = vsub.s32 32, %v295
  %v297 = vshll.u32 %v288, %v295
  %v298 = vshrl.u32 %v280, %v296
  %v299 = vor.u32 %v297, %v298
  %v300 = vsub.s32 4294967266, %v295
  %v301 = vadd.s32 %v300, 127
  %v302 = vshll.u32 %v301, 23
  %v303 = vor.u32 4788187, %v302
  %v304 = vand.u32 2147483647, %v303
  %v306 = vcvt.s32.f32 %v299
  %v307 = vmul.f32 %v306, %v304
  %v308 = vxor.u32 %v307, 2147483648
  %v309 = vsel %vm226, %v308, %v307
  %v310 = vsub.s32 4, %v286
  %v311 = vsel %vm226, %v310, %v286
  %v312 = vsel %vm225, %v117, %v309
  %v313 = vsel %vm225, 0, %v311
  %v314 = vcosq.f32.pop %v312
  %v315 = vsinq.f32.pop %v312
  %vm316 = vweird.f32 %v117
  %v317 = vadd.s32 %v313, 3
  %v318 = vand.u32 %v317, 3
  %vm319 = vcmp.lt.s32.totalorder %v318, 2
  %vm320 = vcmp.eq.s32.totalorder %v318, 0
  %v321 = vxor.u32 %v315, 2147483648
  %v322 = vsel %vm320, %v314, %v321
  %vm323 = vcmp.eq.s32.totalorder %v318, 2
  %v324 = vxor.u32 %v314, 2147483648
  %v325 = vsel %vm323, %v324, %v315
  %v326 = vsel %vm319, %v322, %v325
  %v327 = vsel %vm316, nan, %v326
  %v328 = vand.u32 2147483647, %v118
  %vm329 = vcmp.le.f32.partialorder %v328, 0.7853982
  %vm330 = vcmp.lt.s32.totalorder %v118, 0
  %v331 = vand.u32 %v118, 2139095040
  %v332 = vshrl.u32 %v331, 23
  %v333 = vsub.s32 %v332, 127
  %v334 = vand.u32 2147483647, %v118
  %v335 = vand.u32 %v334, 8388607
  %v336 = vor.u32 %v335, 8388608
  %v337 = vsub.s32 0, %v336
  %v338 = vadd.s32 %v333, 1
  %vm339 = vcmp.gt.s32.totalorder %v338, 0
  %v340 = vsel %vm339, %v338, 0
  %v341 = vshrl.u32 %v340, 5
  %v342 = vand.u32 %v340, 31
  %v343 = vsub.s32 32, %v342
  %v344 = vshrl.u32 683565275, %v343
  %v345 = vshll.u32 683565275, %v342
  %v346 = vshrl.u32 2475754826, %v343
  %v347 = vor.u32 %v345, %v346
  %v348 = vshll.u32 2475754826, %v342
  %v349 = vshrl.u32 2131351028, %v343
  %v350 = vor.u32 %v348, %v349
  %v351 = vshll.u32 2131351028, %v342
  %v352 = vshrl.u32 2102212464, %v343
  %v353 = vor.u32 %v351, %v352
  %v354 = vshll.u32 2102212464, %v342
  %v355 = vshrl.u32 920167782, %v343
  %v356 = vor.u32 %v354, %v355
  %v357 = vshll.u32 920167782, %v342
  %v358 = vshrl.u32 1326507024, %v343
  %v359 = vor.u32 %v357, %v358
  %vm360 = vcmp.lt.s32.totalorder %v341, 1
  %vm361 = vcmp.lt.s32.totalorder %v341, 2
  %vm362 = vcmp.lt.s32.totalorder %v341, 3
  %vm363 = vcmp.lt.s32.totalorder %v341, 4
  %v364 = vsel %vm360, %v344, %v347
  %v365 = vsel %vm363, %v353, 2102212464
  %v366 = vsel %vm362, %v350, %v365
  %v367 = vsel %vm361, %v364, %v366
  %v368 = vsel %vm360, %v347, %v350
  %v369 = vsel %vm363, %v356, 920167782
  %v370 = vsel %vm362, %v353, %v369
  %v371 = vsel %vm361, %v368, %v370
  %v372 = vsel %vm360, %v350, %v353
  %v373 = vsel %vm363, %v359, 1326507024
  %v374 = vsel %vm362, %v356, %v373
  %v375 = vsel %vm361, %v372, %v374
  %v376 = vshll.u32 %v336, 8
  %v377 = vmul.u32.u64.compose %v376, %v375
  %v378 = vextract.low.u32 %v377
  %v379 = vextract.high.u32 %v377
  %v380 = vmul.u32.u64.compose %v376, %v371
  %v381 = vextract.low.u32 %v380
  %v382 = vextract.high.u32 %v380
  %v383 = vmul.u32 %v376, %v367
  %v384 = vadd.s32 %v379, %v381
  %vm385 = vc.u32 %v379, %v381
  %v386 = vadd.s32 %v382, 1
  %v387 = vsel %vm385, %v386, %v382
  %v388 = vadd.s32 %v383, %v387
  %v389 = vadd.s32 %v388, 536870912
  %v390 = vshrl.u32 %v389, 30
  %v391 = vshll.u32 %v390, 30
  %v392 = vsub.s32 %v388, %v391
  %vm393 = vcmp.lt.s32.totalorder %v392, 0
  %v394 = vsub.s32 0, %v392
  %v395 = vsel %vm393, %v394, %v392
  %v396 = vclz %v395
  %v397 = vsub.s32 %v396, 2
  %vm398 = vcmp.gt.s32.totalorder 0, %v397
  %v399 = vsel %vm398, 0, %v397
  %v400 = vsub.s32 32, %v399
  %v401 = vshll.u32 %v392, %v399
  %v402 = vshrl.u32 %v384, %v400
  %v403 = vor.u32 %v401, %v402
  %v404 = vsub.s32 4294967266, %v399
  %v405 = vadd.s32 %v404, 127
  %v406 = vshll.u32 %v405, 23
  %v407 = vor.u32 4788187, %v406
  %v408 = vand.u32 2147483647, %v407
  %v410 = vcvt.s32.f32 %v403
  %v411 = vmul.f32 %v410, %v408
  %v412 = vxor.u32 %v411, 2147483648
  %v413 = vsel %vm330, %v412, %v411
  %v414 = vsub.s32 4, %v390
  %v415 = vsel %vm330, %v414, %v390
  %v416 = vsel %vm329, %v118, %v413
  %v417 = vsel %vm329, 0, %v415
  %v418 = vcosq.f32.pop %v416
  %v419 = vsinq.f32.pop %v416
  %vm420 = vweird.f32 %v118
  %v421 = vadd.s32 %v417, 3
  %v422 = vand.u32 %v421, 3
  %vm423 = vcmp.lt.s32.totalorder %v422, 2
  %vm424 = vcmp.eq.s32.totalorder %v422, 0
  %v425 = vxor.u32 %v419, 2147483648
  %v426 = vsel %vm424, %v418, %v425
  %vm427 = vcmp.eq.s32.totalorder %v422, 2
  %v428 = vxor.u32 %v418, 2147483648
  %v429 = vsel %vm427, %v428, %v419
  %v430 = vsel %vm423, %v426, %v429
  %v431 = vsel %vm420, nan, %v430
  %v432 = vand.u32 2147483647, %v119
  %vm433 = vcmp.le.f32.partialorder %v432, 0.7853982
  %vm434 = vcmp.lt.s32.totalorder %v119, 0
  %v435 = vand.u32 %v119, 2139095040
  %v436 = vshrl.u32 %v435, 23
  %v437 = vsub.s32 %v436, 127
  %v438 = vand.u32 2147483647, %v119
  %v439 = vand.u32 %v438, 8388607
  %v440 = vor.u32 %v439, 8388608
  %v441 = vsub.s32 0, %v440
  %v442 = vadd.s32 %v437, 1
  %vm443 = vcmp.gt.s32.totalorder %v442, 0
  %v444 = vsel %vm443, %v442, 0
  %v445 = vshrl.u32 %v444, 5
  %v446 = vand.u32 %v444, 31
  %v447 = vsub.s32 32, %v446
  %v448 = vshrl.u32 683565275, %v447
  %v449 = vshll.u32 683565275, %v446
  %v450 = vshrl.u32 2475754826, %v447
  %v451 = vor.u32 %v449, %v450
  %v452 = vshll.u32 2475754826, %v446
  %v453 = vshrl.u32 2131351028, %v447
  %v454 = vor.u32 %v452, %v453
  %v455 = vshll.u32 2131351028, %v446
  %v456 = vshrl.u32 2102212464, %v447
  %v457 = vor.u32 %v455, %v456
  %v458 = vshll.u32 2102212464, %v446
  %v459 = vshrl.u32 920167782, %v447
  %v460 = vor.u32 %v458, %v459
  %v461 = vshll.u32 920167782, %v446
  %v462 = vshrl.u32 1326507024, %v447
  %v463 = vor.u32 %v461, %v462
  %vm464 = vcmp.lt.s32.totalorder %v445, 1
  %vm465 = vcmp.lt.s32.totalorder %v445, 2
  %vm466 = vcmp.lt.s32.totalorder %v445, 3
  %vm467 = vcmp.lt.s32.totalorder %v445, 4
  %v468 = vsel %vm464, %v448, %v451
  %v469 = vsel %vm467, %v457, 2102212464
  %v470 = vsel %vm466, %v454, %v469
  %v471 = vsel %vm465, %v468, %v470
  %v472 = vsel %vm464, %v451, %v454
  %v473 = vsel %vm467, %v460, 920167782
  %v474 = vsel %vm466, %v457, %v473
  %v475 = vsel %vm465, %v472, %v474
  %v476 = vsel %vm464, %v454, %v457
  %v477 = vsel %vm467, %v463, 1326507024
  %v478 = vsel %vm466, %v460, %v477
  %v479 = vsel %vm465, %v476, %v478
  %v480 = vshll.u32 %v440, 8
  %v481 = vmul.u32.u64.compose %v480, %v479
  %v482 = vextract.low.u32 %v481
  %v483 = vextract.high.u32 %v481
  %v484 = vmul.u32.u64.compose %v480, %v475
  %v485 = vextract.low.u32 %v484
  %v486 = vextract.high.u32 %v484
  %v487 = vmul.u32 %v480, %v471
  %v488 = vadd.s32 %v483, %v485
  %vm489 = vc.u32 %v483, %v485
  %v490 = vadd.s32 %v486, 1
  %v491 = vsel %vm489, %v490, %v486
  %v492 = vadd.s32 %v487, %v491
  %v493 = vadd.s32 %v492, 536870912
  %v494 = vshrl.u32 %v493, 30
  %v495 = vshll.u32 %v494, 30
  %v496 = vsub.s32 %v492, %v495
  %vm497 = vcmp.lt.s32.totalorder %v496, 0
  %v498 = vsub.s32 0, %v496
  %v499 = vsel %vm497, %v498, %v496
  %v500 = vclz %v499
  %v501 = vsub.s32 %v500, 2
  %vm502 = vcmp.gt.s32.totalorder 0, %v501
  %v503 = vsel %vm502, 0, %v501
  %v504 = vsub.s32 32, %v503
  %v505 = vshll.u32 %v496, %v503
  %v506 = vshrl.u32 %v488, %v504
  %v507 = vor.u32 %v505, %v506
  %v508 = vsub.s32 4294967266, %v503
  %v509 = vadd.s32 %v508, 127
  %v510 = vshll.u32 %v509, 23
  %v511 = vor.u32 4788187, %v510
  %v512 = vand.u32 2147483647, %v511
  %v514 = vcvt.s32.f32 %v507
  %v515 = vmul.f32 %v514, %v512
  %v516 = vxor.u32 %v515, 2147483648
  %v517 = vsel %vm434, %v516, %v515
  %v518 = vsub.s32 4, %v494
  %v519 = vsel %vm434, %v518, %v494
  %v520 = vsel %vm433, %v119, %v517
  %v521 = vsel %vm433, 0, %v519
  %v522 = vcosq.f32.pop %v520
  %v523 = vsinq.f32.pop %v520
  %vm524 = vweird.f32 %v119
  %v525 = vadd.s32 %v521, 3
  %v526 = vand.u32 %v525, 3
  %vm527 = vcmp.lt.s32.totalorder %v526, 2
  %vm528 = vcmp.eq.s32.totalorder %v526, 0
  %v529 = vxor.u32 %v523, 2147483648
  %v530 = vsel %vm528, %v522, %v529
  %vm531 = vcmp.eq.s32.totalorder %v526, 2
  %v532 = vxor.u32 %v522, 2147483648
  %v533 = vsel %vm531, %v532, %v523
  %v534 = vsel %vm527, %v530, %v533
  %v535 = vsel %vm524, nan, %v534
  %vm536 = vcmp.gt.f32.partialorder %v12, 0.5
  %vm537 = vcmp.gt.f32.partialorder %v13, 0.5
  %vm538 = vcmp.gt.f32.partialorder %v14, 0.5
  %vm539 = vcmp.gt.f32.partialorder %v15, 0.5
  %v540 = vsel %vm536, 1, 0
  %v541 = vsel %vm537, 1, 0
  %v542 = vsel %vm538, 1, 0
  %v543 = vsel %vm539, 1, 0
  %544 = vset.pattern.permute.xlu0 4
  %545 = vperm.xlu0 %544, %v540
  %v546 = vpop.permute.xlu0 %545
  %547 = vset.pattern.permute.xlu0 4
  %548 = vperm.xlu0 %547, %v541
  %v549 = vpop.permute.xlu0 %548
  %550 = vset.pattern.permute.xlu0 4
  %551 = vperm.xlu0 %550, %v542
  %v552 = vpop.permute.xlu0 %551
  %553 = vset.pattern.permute.xlu0 4
  %554 = vperm.xlu0 %553, %v543
  %v555 = vpop.permute.xlu0 %554
  %vm556 = vcmp.eq.s32.totalorder %v546, 1
  %vm557 = vcmp.eq.s32.totalorder %v549, 1
  %vm558 = vcmp.eq.s32.totalorder %v552, 1
  %vm559 = vcmp.eq.s32.totalorder %v555, 1
  %v560 = vsel %vm556, %v116, %v223
  %v561 = vsel %vm557, %v117, %v327
  %v562 = vsel %vm558, %v118, %v431
  %v563 = vsel %vm559, %v119, %v535
  %564 = vxpose.xlu0.b32.start [1/16] %v560, 128
  %565 = vxpose.xlu0.b32.cont [2/16] %v561, 128
  %566 = vxpose.xlu0.b32.cont [3/16] %v562, 128
  %567 = vxpose.xlu0.b32.cont [4/16] %v563, 128
  %568 = vxpose.xlu0.b32.cont [5/16] 0.0, 128
  %569 = vxpose.xlu0.b32.cont [6/16] 0.0, 128
  %570 = vxpose.xlu0.b32.cont [7/16] 0.0, 128
  %571 = vxpose.xlu0.b32.cont [8/16] 0.0, 128
  %572 = vxpose.xlu0.b32.cont [9/16] 0.0, 128
  %573 = vxpose.xlu0.b32.cont [10/16] 0.0, 128
  %574 = vxpose.xlu0.b32.cont [11/16] 0.0, 128
  %575 = vxpose.xlu0.b32.cont [12/16] 0.0, 128
  %576 = vxpose.xlu0.b32.cont [13/16] 0.0, 128
  %577 = vxpose.xlu0.b32.cont [14/16] 0.0, 128
  %578 = vxpose.xlu0.b32.cont [15/16] 0.0, 128
  %579 = vxpose.xlu0.b32.end [16/16] 0.0, 128
  %v580 = vpop.trf.xlu0
  %v581 = vpop.trf.xlu0
  %v582 = vpop.trf.xlu0
  %v583 = vpop.trf.xlu0
  %v584 = vpop.trf.xlu0
  %v585 = vpop.trf.xlu0
  %v586 = vpop.trf.xlu0
  %v587 = vpop.trf.xlu0
  %v588 = vpop.trf.xlu0
  %v589 = vpop.trf.xlu0
  %v590 = vpop.trf.xlu0
  %v591 = vpop.trf.xlu0
  %v592 = vpop.trf.xlu0
  %v593 = vpop.trf.xlu0
  %v594 = vpop.trf.xlu0
  %v595 = vpop.trf.xlu0
  %vm596 = vcmask 220160
  %597 = vst.msk [vmem:[%s2] sm:$0xff] %vm596, %v580
  %598 = vst.msk [vmem:[%s2 + $0x8] sm:$0xff] %vm596, %v581
  %599 = vst.msk [vmem:[%s2 + $0x10] sm:$0xff] %vm596, %v582
  %600 = vst.msk [vmem:[%s2 + $0x18] sm:$0xff] %vm596, %v583
  %601 = vst.msk [vmem:[%s2 + $0x20] sm:$0xff] %vm596, %v584
  %602 = vst.msk [vmem:[%s2 + $0x28] sm:$0xff] %vm596, %v585
  %603 = vst.msk [vmem:[%s2 + $0x30] sm:$0xff] %vm596, %v586
  %604 = vst.msk [vmem:[%s2 + $0x38] sm:$0xff] %vm596, %v587
  %605 = vst.msk [vmem:[%s2 + $0x40] sm:$0xff] %vm596, %v588
  %606 = vst.msk [vmem:[%s2 + $0x48] sm:$0xff] %vm596, %v589
  %607 = vst.msk [vmem:[%s2 + $0x50] sm:$0xff] %vm596, %v590
  %608 = vst.msk [vmem:[%s2 + $0x58] sm:$0xff] %vm596, %v591
  %609 = vst.msk [vmem:[%s2 + $0x60] sm:$0xff] %vm596, %v592
  %610 = vst.msk [vmem:[%s2 + $0x68] sm:$0xff] %vm596, %v593
  %611 = vst.msk [vmem:[%s2 + $0x70] sm:$0xff] %vm596, %v594
  %612 = vst.msk [vmem:[%s2 + $0x78] sm:$0xff] %vm596, %v595
  // Predicated region
  $region10: #{tpu_custom_call.1} parent=0 // pred_check
    _
  $region11: #{tpu_custom_call.1} parent=0 // pred_check_branch
    %614 = sbr.rel (0) target = $region13
  $region12: #{tpu_custom_call.1} parent=0 // pred_region
    _
  $region13: #{tpu_custom_call.1} parent=0 // pred_fallthru
    _
  // Predicated region
  $region14: #{tpu_custom_call.1} parent=0 // pred_check
    _
  $region15: #{tpu_custom_call.1} parent=0 // pred_check_branch
    %616 = sbr.rel (0) target = $region17
  $region16: #{tpu_custom_call.1} parent=0 // pred_region
    _
  $region17: #{tpu_custom_call.1} parent=0 // pred_fallthru
    _

</llo_original>
